<compile_context>
chip_gen: v5e
topology: v5e:2x2
jax: 0.10.0
libtpu: 0.0.40
codegen_flags: <defaults>
</compile_context>

<pallas_src>
import jax
import jax.numpy as jnp
from jax.experimental import pallas as pl
from jax.experimental.pallas import tpu as pltpu


# ----------------------------- Pallas kernel ------------------------------ #

def _make_psn_mlp_kernel(n_hidden, hidden_dims):
    """Kernel for `n_hidden` (Linear + folded-BN + ReLU) layers + final Linear
    + sigmoid, channel-major: activations are [c, tm] and the output tile is
    natively [s, tm] (PyTorch's `x.transpose(1, 2)` layout, no transpose op)."""
    offsets = []
    off = 0
    for c in hidden_dims:
        offsets.append(off)
        off += c

    def kernel(*refs):
        x_ref = refs[0]                       # [1, cin, tm]  f32
        bias_ref = refs[1]                    # [sum(c_out), 1] f32 (folded BN biases)
        q_ref = refs[-1]                      # [1, s, tm]    bf16
        h = x_ref[0]                          # [cin, tm] f32
        for i in range(n_hidden):
            w_t = refs[2 + i][...]            # [c_out, c_in] bf16 (BN scale folded, pre-cast)
            c_out = hidden_dims[i]
            b = bias_ref[offsets[i]:offsets[i] + c_out, :]          # [c_out, 1] f32
            acc = jnp.dot(w_t, h.astype(jnp.bfloat16),
                          preferred_element_type=jnp.float32)       # [c_out, tm]
            h = jnp.maximum(acc + b, 0.0)                           # BN(eval) bias + ReLU
        w_last_t = refs[2 + n_hidden][...]                          # [s, c_last] bf16
        logits = jnp.dot(w_last_t, h.astype(jnp.bfloat16),
                         preferred_element_type=jnp.float32)        # [s, tm]
        q = pl.reciprocal(1.0 + jnp.exp(-logits), approx=True)      # sigmoid (EUP recip)
        q_ref[0] = q.astype(q_ref.dtype)                            # bf16, lane-dense store
    return kernel


def _pick_point_tile(B, m_pad, s, cin, hidden_dims, *,
                     budget_bytes=24 << 20, cap=2048):
    """Largest multiple-of-128 tile dividing m_pad whose double-buffered
    input/output blocks + f32 intermediates fit the VMEM budget (kept well
    under v7x's 64 MiB physical VMEM), preferring >= 2 total grid steps so the
    v7x megacore keeps both TensorCores busy."""
    cands = []
    for t in range(128, min(m_pad, cap) + 1, 128):
        if m_pad % t:
            continue
        in_b = 2 * cin * t * 4                      # f32 input block, double-buffered
        out_b = 2 * s * t * 2                       # bf16 output block, double-buffered
        inter_b = 2 * t * (sum(hidden_dims) + s + cin) * 4   # f32 live intermediates
        if in_b + out_b + inter_b > budget_bytes:
            continue
        cands.append(t)
    if not cands:
        return 128
    good = [t for t in cands if B * (m_pad // t) >= 2]
    return max(good) if good else max(cands)


def psn_mlp_pallas(coord2_cm, w_t_bf16, bias_cat, w_last_t_bf16, *, tm=None):
    """coord2_cm: [B, cin, m_pad] f32 -> Q: [B, s, m_pad] bf16 (sigmoid of final
    logits, already in the PyTorch `x.transpose(1, 2)` layout)."""
    B, cin, m_pad = coord2_cm.shape
    s = w_last_t_bf16.shape[0]
    hidden_dims = [w.shape[0] for w in w_t_bf16]
    n_hidden = len(w_t_bf16)
    if tm is None:
        tm = _pick_point_tile(B, m_pad, s, cin, hidden_dims)
    assert m_pad % tm == 0 and tm % 128 == 0

    kernel = _make_psn_mlp_kernel(n_hidden, hidden_dims)

    in_specs = [pl.BlockSpec((1, cin, tm), lambda b, i: (b, 0, i)),
                pl.BlockSpec(bias_cat.shape, lambda b, i: (0, 0))]
    args = [coord2_cm, bias_cat]
    for w in w_t_bf16:
        in_specs.append(pl.BlockSpec(w.shape, lambda b, i: (0, 0)))
        args.append(w)
    in_specs.append(pl.BlockSpec(w_last_t_bf16.shape, lambda b, i: (0, 0)))
    args.append(w_last_t_bf16)

    # Explicit scoped-VMEM limit sized to the actual per-step footprint
    # (double-buffered blocks + weights + f32 intermediates) with headroom,
    # capped below v7x physical VMEM (64 MiB).
    weight_bytes = (sum(w.size for w in w_t_bf16) + w_last_t_bf16.size) * 2 \
        + bias_cat.size * 4
    per_step = (2 * cin * tm * 4 + 2 * s * tm * 2 + 2 * weight_bytes
                + 2 * tm * (sum(hidden_dims) + s + cin) * 4)
    vmem_limit = min(max(int(per_step * 1.5) + (8 << 20), 32 << 20), 60 << 20)

    q = pl.pallas_call(
        kernel,
        out_shape=jax.ShapeDtypeStruct((B, s, m_pad), jnp.bfloat16),
        grid_spec=pltpu.PrefetchScalarGridSpec(
            num_scalar_prefetch=0,
            grid=(B, m_pad // tm),
            in_specs=in_specs,
            out_specs=pl.BlockSpec((1, s, tm), lambda b, i: (b, 0, i)),
        ),
        compiler_params=pltpu.CompilerParams(
            dimension_semantics=("parallel", "parallel"),
            vmem_limit_bytes=vmem_limit),
    )(*args)
    return q                                                    # [B, s, m_pad] bf16


# ------------------------------- JAX glue --------------------------------- #

def index_points(points, idx):
    """points: [B, N, C], idx: [B, ...] -> [B, ..., C]  (matches torch version)."""
    return jax.vmap(lambda p, i: p[i])(points, idx)


def psn_forward(params, coordinate, feature, *, num_to_sample, max_local_num,
                train=False, report_unique=True):
    B, m, _ = coordinate.shape
    assert num_to_sample < m, "The number to sample must be less than input points!"

    # Spherical feature prep (cheap elementwise; acos/atan2 kept in glue since
    # their Mosaic lowering is not guaranteed).  Built channel-major [B, 5, m].
    r = jnp.sqrt(jnp.sum(coordinate * coordinate, axis=-1))        # cdist to origin
    safe_r = jnp.where(r > 0.0, r, 1.0)
    cos_th = jnp.clip(coordinate[:, :, 2] / safe_r, -1.0, 1.0)     # guard r==0 & FP overshoot
    th = jnp.arccos(cos_th)
    fi = jnp.arctan2(coordinate[:, :, 1], coordinate[:, :, 0])
    coord2_cm = jnp.stack(
        [coordinate[:, :, 0], coordinate[:, :, 1], coordinate[:, :, 2], th, fi],
        axis=1)                                                     # [B, 5, m]

    # Pad the point axis to a multiple of 128 -> output stores are always
    # unmasked / lane-dense.  Padded (zero) points are sliced away before top_k.
    m_pad = ((m + 127) // 128) * 128
    if m_pad != m:
        coord2_cm = jnp.pad(coord2_cm, ((0, 0), (0, 0), (0, m_pad - m)))

    # Fold eval-mode BatchNorm scale into the Linear weights, transpose to
    # [c_out, c_in] for channel-major compute, and cast to bf16 once here.
    w_t = [(w * sc).T.astype(jnp.bfloat16)
           for w, sc in zip(params["ws"], params["bn_scale"])]
    w_last_t = params["w_last"].T.astype(jnp.bfloat16)              # [s, c_last]
    bias_cat = jnp.concatenate(
        [b.reshape(-1, 1) for b in params["bn_bias"]], axis=0)      # [sum(c), 1] f32

    Q = psn_mlp_pallas(coord2_cm, w_t, bias_cat, w_last_t)          # [B, s, m_pad] bf16
    if m_pad != m:
        Q = Q[:, :, :m]

    _, grouped_indices = jax.lax.top_k(Q, max_local_num)            # [B, s, n]

    # Unique-num diagnostic report (mirrors the torch.unique loop + prints).
    # NOTE: uses Python print on concrete values; gate off under jax.jit.
    if report_unique:
        flat = grouped_indices.reshape(B, -1)
        srt = jnp.sort(flat, axis=1)
        uniq = 1 + jnp.sum(srt[:, 1:] != srt[:, :-1], axis=1)
        unique_num = jnp.mean(uniq.astype(jnp.float32) / m)
        print()
        print("Report on unique num: ")
        print(unique_num)
        print("---------------------")

    grouped_points = index_points(coordinate, grouped_indices)      # [B, s, n, 3]
    if feature is not None:
        grouped_feature = index_points(feature, grouped_indices)    # [B, s, n, d]
        sampled_points = grouped_points[:, :, 0, :]
        sampled_feature = grouped_feature[:, :, 0, :]
    else:
        sampled_points = grouped_points[:, :, 0, :]
        sampled_feature = None
        grouped_feature = None
    # TODO(synk): train=True branch (F.gumbel_softmax + matmul resampling) not
    # implemented; this reproduces the default inference path (train=False).
    return sampled_points, grouped_points, sampled_feature, grouped_feature, Q


def init_params(key, mlp, num_to_sample, in_dim=5, eps=1e-5):
    """Deterministic synthetic parameters.  BatchNorm is applied in eval mode
    (running stats), pre-folded into per-channel scale/bias."""
    ws, bn_scale, bn_bias = [], [], []
    dims = [in_dim] + list(mlp)
    keys = jax.random.split(key, 4 * len(mlp) + 1)
    ki = 0
    for i in range(len(mlp)):
        bound = 1.0 / float(dims[i]) ** 0.5
        w = jax.random.uniform(keys[ki], (dims[i], dims[i + 1]),
                               minval=-bound, maxval=bound, dtype=jnp.float32)
        ki += 1
        gamma = 1.0 + 0.1 * jax.random.normal(keys[ki], (1, dims[i + 1]),
                                              dtype=jnp.float32); ki += 1
        beta = 0.1 * jax.random.normal(keys[ki], (1, dims[i + 1]),
                                       dtype=jnp.float32); ki += 1
        mean = 0.1 * jax.random.normal(keys[ki], (1, dims[i + 1]),
                                       dtype=jnp.float32); ki += 1
        var = jnp.ones((1, dims[i + 1]), jnp.float32)
        scale = gamma / jnp.sqrt(var + eps)
        bias = beta - mean * scale
        ws.append(w); bn_scale.append(scale); bn_bias.append(bias)
    bound = 1.0 / float(mlp[-1]) ** 0.5
    # PyTorch module: final nn.Linear(..., bias=False) -> no bias here.
    w_last = jax.random.uniform(keys[ki], (mlp[-1], num_to_sample),
                                minval=-bound, maxval=bound, dtype=jnp.float32)
    return {"ws": ws, "bn_scale": bn_scale, "bn_bias": bn_bias, "w_last": w_last}


# --------------------------------- main ------------------------------------ #

if __name__ == "__main__":
    B, m, d = 2, 256, 16
    num_to_sample, max_local_num = 128, 8
    mlp = [32, 64]

    key = jax.random.PRNGKey(0)
    k_coord, k_feat, k_param = jax.random.split(key, 3)
    coordinate = jax.random.normal(k_coord, (B, m, 3), dtype=jnp.float32)
    feature = jax.random.normal(k_feat, (B, m, d), dtype=jnp.float32)
    params = init_params(k_param, mlp, num_to_sample)

    outs = psn_forward(params, coordinate, feature,
                       num_to_sample=num_to_sample,
                       max_local_num=max_local_num, train=False,
                       report_unique=True)
    sampled_points, grouped_points, sampled_feature, grouped_feature, Q = outs
    for o in (sampled_points, grouped_points, sampled_feature, grouped_feature, Q):
        jax.block_until_ready(o)

    assert sampled_points.shape == (B, num_to_sample, 3)
    assert grouped_points.shape == (B, num_to_sample, max_local_num, 3)
    assert sampled_feature.shape == (B, num_to_sample, d)
    assert grouped_feature.shape == (B, num_to_sample, max_local_num, d)
    assert Q.shape == (B, num_to_sample, m)
    assert Q.dtype == jnp.bfloat16
    assert bool(jnp.all(jnp.isfinite(Q.astype(jnp.float32))))
    print("KERNEL_OK")
</pallas_src>

<mosaic_0001>
module attributes {stable_mosaic.version = 11 : i64} {
  func.func @kernel(%arg0: i32, %arg1: i32, %arg2: memref<1x5x256xf32, #tpu.memory_space<vmem>>, %arg3: memref<96x1xf32, #tpu.memory_space<vmem>>, %arg4: memref<32x5xbf16, #tpu.memory_space<vmem>>, %arg5: memref<64x32xbf16, #tpu.memory_space<vmem>>, %arg6: memref<128x64xbf16, #tpu.memory_space<vmem>>, %arg7: memref<1x128x256xbf16, #tpu.memory_space<vmem>>) attributes {dimension_semantics = [#tpu.dimension_semantics<parallel>, #tpu.dimension_semantics<parallel>], iteration_bounds = array<i64: 2, 1>, scalar_prefetch = 0 : i64, scratch_operands = 0 : i64, tpu.core_type = #tpu.core_type<tc>, window_params = [{transform_indices = @transform_0, window_bounds = array<i64: 1, 5, 256>}, {pipeline_mode = #tpu.pipeline_mode<synchronous>, transform_indices = @transform_1, window_bounds = array<i64: 96, 1>}, {pipeline_mode = #tpu.pipeline_mode<synchronous>, transform_indices = @transform_2, window_bounds = array<i64: 32, 5>}, {pipeline_mode = #tpu.pipeline_mode<synchronous>, transform_indices = @transform_3, window_bounds = array<i64: 64, 32>}, {pipeline_mode = #tpu.pipeline_mode<synchronous>, transform_indices = @transform_4, window_bounds = array<i64: 128, 64>}, {transform_indices = @transform_5, window_bounds = array<i64: 1, 128, 256>}]} {
    %c0 = arith.constant 0 : index
    %c0_0 = arith.constant 0 : index
    %c0_1 = arith.constant 0 : index
    %0 = vector.load %arg2[%c0, %c0_0, %c0_1] : memref<1x5x256xf32, #tpu.memory_space<vmem>>, vector<1x5x256xf32>
    %1 = vector.shape_cast %0 : vector<1x5x256xf32> to vector<5x256xf32>
    %c0_2 = arith.constant 0 : index
    %c0_3 = arith.constant 0 : index
    %2 = vector.load %arg4[%c0_2, %c0_3] : memref<32x5xbf16, #tpu.memory_space<vmem>>, vector<32x5xbf16>
    %c0_4 = arith.constant 0 : index
    %c0_5 = arith.constant 0 : index
    %3 = vector.load %arg3[%c0_4, %c0_5] : memref<96x1xf32, #tpu.memory_space<vmem>>, vector<32x1xf32>
    %4 = arith.truncf %1 : vector<5x256xf32> to vector<5x256xbf16>
    %cst = arith.constant dense<0.000000e+00> : vector<32x256xf32>
    %5 = tpu.matmul %2, %4, %cst {dimension_numbers = #tpu.dot_dimension_numbers<[1], [0], [0], [1], [0, 0, 1, 1], [], []>} : vector<32x5xbf16>, vector<5x256xbf16>, vector<32x256xf32> -> vector<32x256xf32>
    %6 = vector.broadcast %3 : vector<32x1xf32> to vector<32x256xf32>
    %7 = arith.addf %5, %6 : vector<32x256xf32>
    %cst_6 = arith.constant 0.000000e+00 : f32
    %8 = vector.broadcast %cst_6 : f32 to vector<32x256xf32>
    %9 = arith.maximumf %7, %8 : vector<32x256xf32>
    %c0_7 = arith.constant 0 : index
    %c0_8 = arith.constant 0 : index
    %10 = vector.load %arg5[%c0_7, %c0_8] : memref<64x32xbf16, #tpu.memory_space<vmem>>, vector<64x32xbf16>
    %c32 = arith.constant 32 : index
    %c0_9 = arith.constant 0 : index
    %11 = vector.load %arg3[%c32, %c0_9] : memref<96x1xf32, #tpu.memory_space<vmem>>, vector<64x1xf32>
    %12 = arith.truncf %9 : vector<32x256xf32> to vector<32x256xbf16>
    %cst_10 = arith.constant dense<0.000000e+00> : vector<64x256xf32>
    %13 = tpu.matmul %10, %12, %cst_10 {dimension_numbers = #tpu.dot_dimension_numbers<[1], [0], [0], [1], [0, 0, 1, 1], [], []>} : vector<64x32xbf16>, vector<32x256xbf16>, vector<64x256xf32> -> vector<64x256xf32>
    %14 = vector.broadcast %11 : vector<64x1xf32> to vector<64x256xf32>
    %15 = arith.addf %13, %14 : vector<64x256xf32>
    %cst_11 = arith.constant 0.000000e+00 : f32
    %16 = vector.broadcast %cst_11 : f32 to vector<64x256xf32>
    %17 = arith.maximumf %15, %16 : vector<64x256xf32>
    %c0_12 = arith.constant 0 : index
    %c0_13 = arith.constant 0 : index
    %18 = vector.load %arg6[%c0_12, %c0_13] : memref<128x64xbf16, #tpu.memory_space<vmem>>, vector<128x64xbf16>
    %19 = arith.truncf %17 : vector<64x256xf32> to vector<64x256xbf16>
    %cst_14 = arith.constant dense<0.000000e+00> : vector<128x256xf32>
    %20 = tpu.matmul %18, %19, %cst_14 {dimension_numbers = #tpu.dot_dimension_numbers<[1], [0], [0], [1], [0, 0, 1, 1], [], []>} : vector<128x64xbf16>, vector<64x256xbf16>, vector<128x256xf32> -> vector<128x256xf32>
    %cst_15 = arith.constant 0.000000e+00 : f32
    %21 = vector.broadcast %cst_15 : f32 to vector<128x256xf32>
    %22 = arith.subf %21, %20 : vector<128x256xf32>
    %23 = math.exp %22 : vector<128x256xf32>
    %cst_16 = arith.constant 1.000000e+00 : f32
    %24 = vector.broadcast %cst_16 : f32 to vector<128x256xf32>
    %25 = arith.addf %24, %23 : vector<128x256xf32>
    %26 = tpu.reciprocal %25 {approx = true} : vector<128x256xf32> -> vector<128x256xf32>
    %27 = arith.truncf %26 : vector<128x256xf32> to vector<128x256xbf16>
    %c0_17 = arith.constant 0 : index
    %c0_18 = arith.constant 0 : index
    %c0_19 = arith.constant 0 : index
    %28 = vector.load %arg7[%c0_17, %c0_18, %c0_19] : memref<1x128x256xbf16, #tpu.memory_space<vmem>>, vector<1x128x256xbf16>
    %29 = vector.shape_cast %28 : vector<1x128x256xbf16> to vector<128x256xbf16>
    %30 = vector.shape_cast %27 : vector<128x256xbf16> to vector<1x128x256xbf16>
    tpu.vector_store %arg7[%c0_17, %c0_18, %c0_19], %30 {strides = array<i32>} : memref<1x128x256xbf16, #tpu.memory_space<vmem>>, vector<1x128x256xbf16>,
    return
  }
  func.func @transform_0(%arg0: i32, %arg1: i32) -> (i32, i32, i32) {
    %c0_i32 = arith.constant 0 : i32
    %c0_i32_0 = arith.constant 0 : i32
    return %arg0, %c0_i32, %arg1 : i32, i32, i32
  }
  func.func @transform_1(%arg0: i32, %arg1: i32) -> (i32, i32) {
    %c0_i32 = arith.constant 0 : i32
    %c0_i32_0 = arith.constant 0 : i32
    %c0_i32_1 = arith.constant 0 : i32
    return %c0_i32, %c0_i32_0 : i32, i32
  }
  func.func @transform_2(%arg0: i32, %arg1: i32) -> (i32, i32) {
    %c0_i32 = arith.constant 0 : i32
    %c0_i32_0 = arith.constant 0 : i32
    %c0_i32_1 = arith.constant 0 : i32
    return %c0_i32, %c0_i32_0 : i32, i32
  }
  func.func @transform_3(%arg0: i32, %arg1: i32) -> (i32, i32) {
    %c0_i32 = arith.constant 0 : i32
    %c0_i32_0 = arith.constant 0 : i32
    %c0_i32_1 = arith.constant 0 : i32
    return %c0_i32, %c0_i32_0 : i32, i32
  }
  func.func @transform_4(%arg0: i32, %arg1: i32) -> (i32, i32) {
    %c0_i32 = arith.constant 0 : i32
    %c0_i32_0 = arith.constant 0 : i32
    %c0_i32_1 = arith.constant 0 : i32
    return %c0_i32, %c0_i32_0 : i32, i32
  }
  func.func @transform_5(%arg0: i32, %arg1: i32) -> (i32, i32, i32) {
    %c0_i32 = arith.constant 0 : i32
    %c0_i32_0 = arith.constant 0 : i32
    return %arg0, %c0_i32, %arg1 : i32, i32, i32
  }
}

</mosaic_0001>

<llo_original>
// kernel: tpu_custom_call.1
$region0: #{tpu_custom_call.1}
  #allocation0 [shape = 'u32[]', space=smem, size = 0x4, offset = 0x4, fixed_abs, tag = 'smem constant byte address 0x4 - core index']
  #allocation1 [shape = 'u32[72,128]{1,0:T(1,128)}', space=vmem, size = 0x9000, scoped, tag = 'internal scratch']
  %s0 = inlined_call_operand.vmem [shape: f32[2,5,256], index: 0, kind: input, shape index: {}]
  %s1 = inlined_call_operand.vmem [shape: f32[96,1], index: 1, kind: input, shape index: {}]
  %s2 = inlined_call_operand.vmem [shape: bf16[32,5], index: 2, kind: input, shape index: {}]
  %s3 = inlined_call_operand.vmem [shape: bf16[64,32], index: 3, kind: input, shape index: {}]
  %s4 = inlined_call_operand.vmem [shape: bf16[128,64], index: 4, kind: input, shape index: {}]
  %s5 = inlined_call_operand.hbm [shape: bf16[2,128,256], index: 5, kind: output, shape index: {}]
  %s6 = sld [smem:[#allocation0]]
  $region53: #{tpu_custom_call.1} parent=0
    _
  %s8 = ssub.s32 1, %s6
  %s9 = scalar_select 0, %s8, %s6
  $region1: #{tpu_custom_call.1} parent=0
    #allocation2 [shape = 'u8[131072]{0}', space=vmem, size = 0x20000, scoped, tag = 'output window, operand 0']
    #allocation3 [shape = 's32[2]{0}', space=sflag, size = 0x8, scoped, tag = 'scoped memory for tpu_custom_call.1']
    %10 = vsyncpa [#allocation3], 0
    %s11 = scalar_lea.sflag [#allocation3], 1
    %12 = vsyncpa %s11, 0
    loop: start=0, step=1, limit=4
    $region2: #{tpu_custom_call.1} parent=1 // loop_pre_header
      _
    $region3: #{tpu_custom_call.1} parent=1 // loop_header
      %s14 = sphi 0, %s18
      %p15 = scmp.ge.s32.totalorder %s14, 4
      %s21 = sphi 0, %s33
      %s22 = sphi 0, %s29
      %s23 = sphi 0, %s21
      %s24 = sphi 0, %s22
      %s25 = sphi 0, %s23
      %s26 = sphi 0, %s24
      %s38 = sphi 0, %s40
      %s41 = sphi 0, %s38
      %s42 = sphi 0, %s41
      %s58 = sphi 0, %s42
      %s62 = sphi 0, %s62
      %s64 = sphi 0, %s62
      %s65 = sphi 0, %s64
      %s79 = sphi 0, %s65
      %s83 = sphi 0, %s83
      %s85 = sphi 0, %s83
      %s86 = sphi 0, %s85
      %s100 = sphi 0, %s86
      %s104 = sphi 0, %s104
      %s106 = sphi 0, %s104
      %s107 = sphi 0, %s106
      %s121 = sphi 0, %s107
      %s125 = sphi 0, %s125
      %s127 = sphi 0, %s125
      %s128 = sphi 0, %s127
      %s142 = sphi 0, %s128
      %s150 = sphi 0, %s152
      %s153 = sphi 0, %s150
      %s154 = sphi 0, %s153
      %s170 = sphi 0, %s154
    $region4: #{tpu_custom_call.1} parent=1 // loop_header_branch
      %17 = sbr.rel (%p15) target = $region8
    $region5: #{tpu_custom_call.1} parent=1 // loop_body
      %s19 = ssub.s32 %s14, 1
      %s20 = ssub.s32 %s14, 2
      %s27 = sadd.s32 1, %s22
      %p28 = scmp.ge.s32.totalorder %s27, 1
      %s29 = scalar_select %p28, 0, %s27
      %s30 = sadd.s32 1, %s21
      %s31 = scalar_select %p28, %s30, %s21
      %p32 = scmp.ge.s32.totalorder %s31, 2
      %s33 = scalar_select %p32, 0, %s31
      %s34 = ssub.s32 %s21, %s33
      %s35 = ssub.s32 %s22, %s29
      %s36 = sor.u32 %s34, %s35
      %p37 = scmp.eq.s32.totalorder %s36, 0
      %s39 = sadd.s32 %s38, 1
      %s40 = scalar_select %p37, %s38, %s39
      %p43 = pneg %p37
      %p44 = scmp.eq.s32.totalorder %s14, 1
      %p45 = por %p43, %p44
      %p46 = scmp.ne.s32.totalorder %s38, %s41
      %p47 = scmp.eq.s32.totalorder %s14, 0
      %p48 = por %p46, %p47
      %p49 = scmp.ne.s32.totalorder %s38, %s41
      %p50 = scmp.eq.s32.totalorder %s19, 1
      %p51 = por %p49, %p50
      %p52 = scmp.ne.s32.totalorder %s41, %s42
      %p53 = scmp.eq.s32.totalorder %s19, 0
      %p54 = por %p52, %p53
      %p55 = scmp.ne.s32.totalorder %s41, %s42
      %p56 = scmp.eq.s32.totalorder %s20, 1
      %p57 = por %p55, %p56
      %p59 = scmp.ne.s32.totalorder %s42, %s58
      %p60 = scmp.eq.s32.totalorder %s20, 0
      %p61 = por %p59, %p60
      %s63 = sadd.s32 %s62, 1
      %p66 = scmp.eq.s32.totalorder %s14, 1
      %p67 = scmp.ne.s32.totalorder %s62, %s64
      %p68 = scmp.eq.s32.totalorder %s14, 0
      %p69 = por %p67, %p68
      %p70 = scmp.ne.s32.totalorder %s62, %s64
      %p71 = scmp.eq.s32.totalorder %s19, 1
      %p72 = por %p70, %p71
      %p73 = scmp.ne.s32.totalorder %s64, %s65
      %p74 = scmp.eq.s32.totalorder %s19, 0
      %p75 = por %p73, %p74
      %p76 = scmp.ne.s32.totalorder %s64, %s65
      %p77 = scmp.eq.s32.totalorder %s20, 1
      %p78 = por %p76, %p77
      %p80 = scmp.ne.s32.totalorder %s65, %s79
      %p81 = scmp.eq.s32.totalorder %s20, 0
      %p82 = por %p80, %p81
      %s84 = sadd.s32 %s83, 1
      %p87 = scmp.eq.s32.totalorder %s14, 1
      %p88 = scmp.ne.s32.totalorder %s83, %s85
      %p89 = scmp.eq.s32.totalorder %s14, 0
      %p90 = por %p88, %p89
      %p91 = scmp.ne.s32.totalorder %s83, %s85
      %p92 = scmp.eq.s32.totalorder %s19, 1
      %p93 = por %p91, %p92
      %p94 = scmp.ne.s32.totalorder %s85, %s86
      %p95 = scmp.eq.s32.totalorder %s19, 0
      %p96 = por %p94, %p95
      %p97 = scmp.ne.s32.totalorder %s85, %s86
      %p98 = scmp.eq.s32.totalorder %s20, 1
      %p99 = por %p97, %p98
      %p101 = scmp.ne.s32.totalorder %s86, %s100
      %p102 = scmp.eq.s32.totalorder %s20, 0
      %p103 = por %p101, %p102
      %s105 = sadd.s32 %s104, 1
      %p108 = scmp.eq.s32.totalorder %s14, 1
      %p109 = scmp.ne.s32.totalorder %s104, %s106
      %p110 = scmp.eq.s32.totalorder %s14, 0
      %p111 = por %p109, %p110
      %p112 = scmp.ne.s32.totalorder %s104, %s106
      %p113 = scmp.eq.s32.totalorder %s19, 1
      %p114 = por %p112, %p113
      %p115 = scmp.ne.s32.totalorder %s106, %s107
      %p116 = scmp.eq.s32.totalorder %s19, 0
      %p117 = por %p115, %p116
      %p118 = scmp.ne.s32.totalorder %s106, %s107
      %p119 = scmp.eq.s32.totalorder %s20, 1
      %p120 = por %p118, %p119
      %p122 = scmp.ne.s32.totalorder %s107, %s121
      %p123 = scmp.eq.s32.totalorder %s20, 0
      %p124 = por %p122, %p123
      %s126 = sadd.s32 %s125, 1
      %p129 = scmp.eq.s32.totalorder %s14, 1
      %p130 = scmp.ne.s32.totalorder %s125, %s127
      %p131 = scmp.eq.s32.totalorder %s14, 0
      %p132 = por %p130, %p131
      %p133 = scmp.ne.s32.totalorder %s125, %s127
      %p134 = scmp.eq.s32.totalorder %s19, 1
      %p135 = por %p133, %p134
      %p136 = scmp.ne.s32.totalorder %s127, %s128
      %p137 = scmp.eq.s32.totalorder %s19, 0
      %p138 = por %p136, %p137
      %p139 = scmp.ne.s32.totalorder %s127, %s128
      %p140 = scmp.eq.s32.totalorder %s20, 1
      %p141 = por %p139, %p140
      %p143 = scmp.ne.s32.totalorder %s128, %s142
      %p144 = scmp.eq.s32.totalorder %s20, 0
      %p145 = por %p143, %p144
      %s146 = ssub.s32 %s21, %s33
      %s147 = ssub.s32 %s22, %s29
      %s148 = sor.u32 %s146, %s147
      %p149 = scmp.eq.s32.totalorder %s148, 0
      %s151 = sadd.s32 %s150, 1
      %s152 = scalar_select %p149, %s150, %s151
      %p155 = pneg %p149
      %p156 = scmp.eq.s32.totalorder %s14, 1
      %p157 = por %p155, %p156
      %p158 = scmp.ne.s32.totalorder %s150, %s153
      %p159 = scmp.eq.s32.totalorder %s14, 0
      %p160 = por %p158, %p159
      %p161 = scmp.ne.s32.totalorder %s150, %s153
      %p162 = scmp.eq.s32.totalorder %s19, 1
      %p163 = por %p161, %p162
      %p164 = scmp.ne.s32.totalorder %s153, %s154
      %p165 = scmp.eq.s32.totalorder %s19, 0
      %p166 = por %p164, %p165
      %p167 = scmp.ne.s32.totalorder %s153, %s154
      %p168 = scmp.eq.s32.totalorder %s20, 1
      %p169 = por %p167, %p168
      %p171 = scmp.ne.s32.totalorder %s154, %s170
      %p172 = scmp.eq.s32.totalorder %s20, 0
      %p173 = por %p171, %p172
      %p174 = scmp.le.s32.totalorder 1, %s14
      %p175 = scmp.lt.s32.totalorder %s14, 3
      %p176 = pnand %p174, %p175
      %p177 = pneg %p176
      // Predicated region
      $region9: #{tpu_custom_call.1} parent=5 // pred_check
        _
      $region10: #{tpu_custom_call.1} parent=5 // pred_check_branch
        %179 = sbr.rel (%p176) target = $region12
      $region11: #{tpu_custom_call.1} parent=5 // pred_region
        %s180 = ssub.s32 %s14, 1
        // Predicated region
        $region13: #{tpu_custom_call.1} parent=11 // pred_check
          %p181 = pneg %p75
        $region14: #{tpu_custom_call.1} parent=11 // pred_check_branch
          %183 = sbr.rel (%p181) target = $region16
        $region15: #{tpu_custom_call.1} parent=11 // pred_region
          _
        $region16: #{tpu_custom_call.1} parent=11 // pred_fallthru
          _
        // Predicated region
        $region17: #{tpu_custom_call.1} parent=11 // pred_check
          %p184 = pneg %p96
        $region18: #{tpu_custom_call.1} parent=11 // pred_check_branch
          %186 = sbr.rel (%p184) target = $region20
        $region19: #{tpu_custom_call.1} parent=11 // pred_region
          _
        $region20: #{tpu_custom_call.1} parent=11 // pred_fallthru
          _
        // Predicated region
        $region21: #{tpu_custom_call.1} parent=11 // pred_check
          %p187 = pneg %p117
        $region22: #{tpu_custom_call.1} parent=11 // pred_check_branch
          %189 = sbr.rel (%p187) target = $region24
        $region23: #{tpu_custom_call.1} parent=11 // pred_region
          _
        $region24: #{tpu_custom_call.1} parent=11 // pred_fallthru
          _
        // Predicated region
        $region25: #{tpu_custom_call.1} parent=11 // pred_check
          %p190 = pneg %p138
        $region26: #{tpu_custom_call.1} parent=11 // pred_check_branch
          %192 = sbr.rel (%p190) target = $region28
        $region27: #{tpu_custom_call.1} parent=11 // pred_region
          _
        $region28: #{tpu_custom_call.1} parent=11 // pred_fallthru
          _
      $region12: #{tpu_custom_call.1} parent=5 // pred_fallthru
        _
      %p193 = scmp.lt.s32.totalorder %s14, 2
      // Predicated region
      $region29: #{tpu_custom_call.1} parent=5 // pred_check
        %p194 = pneg %p193
      $region30: #{tpu_custom_call.1} parent=5 // pred_check_branch
        %196 = sbr.rel (%p194) target = $region32
      $region31: #{tpu_custom_call.1} parent=5 // pred_region
        // Predicated region
        $region33: #{tpu_custom_call.1} parent=31 // pred_check
          %p197 = pneg %p48
        $region34: #{tpu_custom_call.1} parent=31 // pred_check_branch
          %199 = sbr.rel (%p197) target = $region36
        $region35: #{tpu_custom_call.1} parent=31 // pred_region
          %s200 = smul.u32 2, %s22
          %p201 = scmp.lt.s32.totalorder %s21, 1
          %s202 = scalar_select %p201, %s21, 1
          %p203 = scmp.lt.s32.totalorder %s200, 1
          %s204 = scalar_select %p203, %s200, 1
          %s205 = smul.addr %s202, 2
          %s206 = sadd.s32 %s204, %s205
          %s207 = smul.addr %s206, 8
          %s208 = scalar_lea.vmem %s0, %s207
          %s209 = smul.u32 2, %s22
        $region36: #{tpu_custom_call.1} parent=31 // pred_fallthru
          _
      $region32: #{tpu_custom_call.1} parent=5 // pred_fallthru
        _
      %p210 = scmp.le.s32.totalorder 1, %s14
      %p211 = scmp.lt.s32.totalorder %s14, 3
      %p212 = pnand %p210, %p211
      %p213 = pneg %p212
      // Predicated region
      $region37: #{tpu_custom_call.1} parent=5 // pred_check
        _
      $region38: #{tpu_custom_call.1} parent=5 // pred_check_branch
        %215 = sbr.rel (%p212) target = $region40
      $region39: #{tpu_custom_call.1} parent=5 // pred_region
        %s216 = ssub.s32 %s14, 1
        %s217 = smul.u32 2, %s24
        %p218 = scmp.lt.s32.totalorder %s23, 1
        %s219 = scalar_select %p218, %s23, 1
        %p220 = scmp.lt.s32.totalorder %s217, 1
        %s221 = scalar_select %p220, %s217, 1
        %s222 = smul.addr %s219, 2
        %s223 = sadd.s32 %s221, %s222
        %s224 = smul.addr %s223, 8
        %s225 = scalar_lea.vmem %s0, %s224
        %p226 = pneg %p54
        %p227 = pneg %p51
        %p228 = pneg %p75
        %p229 = pneg %p72
        %p230 = pneg %p96
        %p231 = pneg %p93
        %p232 = pneg %p117
        %p233 = pneg %p114
        %p234 = pneg %p138
        %p235 = pneg %p135
        %p236 = pneg %p166
        %p237 = pneg %p163
        %s238 = sand.u32 %s153, 1
        %s239 = scalar_lea.sflag [#allocation3], %s238
        %s240 = sand.u32 %s153, 1
        %s241 = smul.addr %s240, 128
        %s242 = scalar_lea.vmem [#allocation2], %s241
        %s243 = smul.u32 2, %s24
        %p244 = scmp.lt.s32.totalorder %s23, 1
        %s245 = scalar_select %p244, %s23, 1
        %p246 = scmp.lt.s32.totalorder %s243, 1
        %s247 = scalar_select %p246, %s243, 1
        %s248 = smul.addr %s245, 2
        %s249 = sadd.s32 %s247, %s248
        %s250 = smul.addr %s249, 8
        %s251 = scalar_lea.vmem %s0, %s250
        %s252 = smul.u32 2, %s24
        %s253 = smul.u32 2, %s24
        %v255 = vld [vmem:[%s251] sm:$0x1f]
        %v256 = vld [vmem:[%s251 + $0x8] sm:$0x1f]
        %v257 = vld [vmem:[%s2] sm:$0xf]
        %v258 = vld [vmem:[%s2 + $0x4] sm:$0xf]
        %v259 = vld [vmem:[%s2 + $0x8] sm:$0xf]
        %v260 = vld [vmem:[%s2 + $0xc] sm:$0xf]
        %v261 = vld [vmem:[%s1] sm:$0xff]
        %v262 = vld [vmem:[%s1 + $0x8] sm:$0xff]
        %v263 = vld [vmem:[%s1 + $0x10] sm:$0xff]
        %v264 = vld [vmem:[%s1 + $0x18] sm:$0xff]
        %v265 = vpack.c.bf16 %v255, %v255
        %v266 = vpack.c.bf16 %v256, %v256
        %268 = vset.pattern.permute.xlu0 0
        %269 = vperm.xlu0 %268, %v261
        %v270 = vpop.permute.xlu0 %269
        %273 = vset.pattern.permute.xlu0 0
        %274 = vperm.xlu0 %273, %v262
        %v275 = vpop.permute.xlu0 %274
        %278 = vset.pattern.permute.xlu0 0
        %279 = vperm.xlu0 %278, %v263
        %v280 = vpop.permute.xlu0 %279
        %283 = vset.pattern.permute.xlu0 0
        %284 = vperm.xlu0 %283, %v264
        %v285 = vpop.permute.xlu0 %284
        %v291 = vunpack.c.l.b16 %v257
        %v292 = vunpack.c.l.b16 %v258
        %v293 = vunpack.c.l.b16 %v259
        %v294 = vunpack.c.l.b16 %v260
        %v295 = vpack.c.b16 %v292, %v291
        %v296 = vpack.c.b16 %v294, %v293
        %vm297 = vcmask 39936
        %v299 = vsel %vm297, %v295, 0
        %v302 = vsel %vm297, %v296, 0
        %vm304 = vcmask 1041408
        %vm305 = vcmask 1042432
        %v306 = vsel %vm304, 4294967295, 65535
        %v307 = vsel %vm305, %v306, 0
        %v309 = vand.u32 %v265, %v307
        %v312 = vand.u32 %v266, %v307
        %314 = vmatpush.bf16.msra.mxu0 0
        %315 = vmatpush.bf16.msra.mxu0 0
        %316 = vmatpush.bf16.msra.mxu0 0
        %317 = vmatpush.bf16.msra.mxu0 0
        %318 = vmatpush.bf16.msra.mxu0 0
        %319 = vmatpush.bf16.msra.mxu0 0
        %320 = vmatpush.bf16.msra.mxu0 0
        %321 = vmatpush.bf16.msra.mxu0 %v309
        %322 = vmatmul.bf16.gmra.mxu0 %v299
        %v323 = vpop.f32.mrf.mxu0
        %v324 = vadd.f32 %v270, %v323
        %v325 = vpop.f32.mrf.mxu0
        %v326 = vadd.f32 %v275, %v325
        %327 = vmatmul.bf16.gmra.mxu0 %v302
        %v328 = vpop.f32.mrf.mxu0
        %v329 = vadd.f32 %v280, %v328
        %v330 = vpop.f32.mrf.mxu0
        %v331 = vadd.f32 %v285, %v330
        %332 = vdwg.mxu0
        %333 = vmatpush.bf16.msra.mxu0 0
        %334 = vmatpush.bf16.msra.mxu0 0
        %335 = vmatpush.bf16.msra.mxu0 0
        %336 = vmatpush.bf16.msra.mxu0 0
        %337 = vmatpush.bf16.msra.mxu0 0
        %338 = vmatpush.bf16.msra.mxu0 0
        %339 = vmatpush.bf16.msra.mxu0 0
        %340 = vmatpush.bf16.msra.mxu0 %v312
        %341 = vmatmul.bf16.gmra.mxu0 %v299
        %v342 = vpop.f32.mrf.mxu0
        %v343 = vadd.f32 %v270, %v342
        %v344 = vpop.f32.mrf.mxu0
        %v345 = vadd.f32 %v275, %v344
        %346 = vmatmul.bf16.gmra.mxu0 %v302
        %v347 = vpop.f32.mrf.mxu0
        %v348 = vadd.f32 %v280, %v347
        %v349 = vpop.f32.mrf.mxu0
        %v350 = vadd.f32 %v285, %v349
        %351 = vdwg.mxu0
        %v352 = vmax.f32 %v324, 0.0
        %v353 = vmax.f32 %v343, 0.0
        %v354 = vmax.f32 %v326, 0.0
        %v355 = vmax.f32 %v345, 0.0
        %v356 = vmax.f32 %v329, 0.0
        %v357 = vmax.f32 %v348, 0.0
        %v358 = vmax.f32 %v331, 0.0
        %v359 = vmax.f32 %v350, 0.0
        %v360 = vld [vmem:[%s3] sm:$0xf]
        %v361 = vld [vmem:[%s3 + $0x4] sm:$0xf]
        %v362 = vld [vmem:[%s3 + $0x8] sm:$0xf]
        %v363 = vld [vmem:[%s3 + $0xc] sm:$0xf]
        %v364 = vld [vmem:[%s3 + $0x10] sm:$0xf]
        %v365 = vld [vmem:[%s3 + $0x14] sm:$0xf]
        %v366 = vld [vmem:[%s3 + $0x18] sm:$0xf]
        %v367 = vld [vmem:[%s3 + $0x1c] sm:$0xf]
        %v368 = vld [vmem:[%s1 + $0x20] sm:$0xff]
        %v369 = vld [vmem:[%s1 + $0x28] sm:$0xff]
        %v370 = vld [vmem:[%s1 + $0x30] sm:$0xff]
        %v371 = vld [vmem:[%s1 + $0x38] sm:$0xff]
        %v372 = vld [vmem:[%s1 + $0x40] sm:$0xff]
        %v373 = vld [vmem:[%s1 + $0x48] sm:$0xff]
        %v374 = vld [vmem:[%s1 + $0x50] sm:$0xff]
        %v375 = vld [vmem:[%s1 + $0x58] sm:$0xff]
        %v376 = vpack.c.bf16 %v354, %v352
        %v377 = vpack.c.bf16 %v355, %v353
        %v378 = vpack.c.bf16 %v358, %v356
        %v379 = vpack.c.bf16 %v359, %v357
        %381 = vset.pattern.permute.xlu0 0
        %382 = vperm.xlu0 %381, %v368
        %v383 = vpop.permute.xlu0 %382
        %386 = vset.pattern.permute.xlu0 0
        %387 = vperm.xlu0 %386, %v369
        %v388 = vpop.permute.xlu0 %387
        %391 = vset.pattern.permute.xlu0 0
        %392 = vperm.xlu0 %391, %v370
        %v393 = vpop.permute.xlu0 %392
        %396 = vset.pattern.permute.xlu0 0
        %397 = vperm.xlu0 %396, %v371
        %v398 = vpop.permute.xlu0 %397
        %401 = vset.pattern.permute.xlu0 0
        %402 = vperm.xlu0 %401, %v372
        %v403 = vpop.permute.xlu0 %402
        %406 = vset.pattern.permute.xlu0 0
        %407 = vperm.xlu0 %406, %v373
        %v408 = vpop.permute.xlu0 %407
        %411 = vset.pattern.permute.xlu0 0
        %412 = vperm.xlu0 %411, %v374
        %v413 = vpop.permute.xlu0 %412
        %416 = vset.pattern.permute.xlu0 0
        %417 = vperm.xlu0 %416, %v375
        %v418 = vpop.permute.xlu0 %417
        %v428 = vunpack.c.l.b16 %v360
        %v429 = vunpack.c.l.b16 %v361
        %v430 = vunpack.c.l.b16 %v362
        %v431 = vunpack.c.l.b16 %v363
        %v432 = vunpack.c.l.b16 %v364
        %v433 = vunpack.c.l.b16 %v365
        %v434 = vunpack.c.l.b16 %v366
        %v435 = vunpack.c.l.b16 %v367
        %v436 = vpack.c.b16 %v429, %v428
        %v437 = vpack.c.b16 %v431, %v430
        %v438 = vpack.c.b16 %v433, %v432
        %v439 = vpack.c.b16 %v435, %v434
        %vm440 = vcmask 261120
        %v442 = vsel %vm440, %v436, 0
        %v445 = vsel %vm440, %v437, 0
        %v448 = vsel %vm440, %v438, 0
        %v451 = vsel %vm440, %v439, 0
        %453 = vmatpush.bf16.msra.mxu0 0
        %454 = vmatpush.bf16.msra.mxu0 0
        %455 = vmatpush.bf16.msra.mxu0 0
        %456 = vmatpush.bf16.msra.mxu0 0
        %457 = vmatpush.bf16.msra.mxu0 0
        %458 = vmatpush.bf16.msra.mxu0 0
        %459 = vmatpush.bf16.msra.mxu0 %v378
        %460 = vmatpush.bf16.msra.mxu0 %v376
        %461 = vmatmul.bf16.gmra.mxu0 %v442
        %v462 = vpop.f32.mrf.mxu0
        %v463 = vadd.f32 %v383, %v462
        %v464 = vpop.f32.mrf.mxu0
        %v465 = vadd.f32 %v388, %v464
        %466 = vmatmul.bf16.gmra.mxu0 %v445
        %v467 = vpop.f32.mrf.mxu0
        %v468 = vadd.f32 %v393, %v467
        %v469 = vpop.f32.mrf.mxu0
        %v470 = vadd.f32 %v398, %v469
        %471 = vmatmul.bf16.gmra.mxu0 %v448
        %v472 = vpop.f32.mrf.mxu0
        %v473 = vadd.f32 %v403, %v472
        %v474 = vpop.f32.mrf.mxu0
        %v475 = vadd.f32 %v408, %v474
        %476 = vmatmul.bf16.gmra.mxu0 %v451
        %v477 = vpop.f32.mrf.mxu0
        %v478 = vadd.f32 %v413, %v477
        %v479 = vpop.f32.mrf.mxu0
        %v480 = vadd.f32 %v418, %v479
        %481 = vdwg.mxu0
        %482 = vmatpush.bf16.msra.mxu0 0
        %483 = vmatpush.bf16.msra.mxu0 0
        %484 = vmatpush.bf16.msra.mxu0 0
        %485 = vmatpush.bf16.msra.mxu0 0
        %486 = vmatpush.bf16.msra.mxu0 0
        %487 = vmatpush.bf16.msra.mxu0 0
        %488 = vmatpush.bf16.msra.mxu0 %v379
        %489 = vmatpush.bf16.msra.mxu0 %v377
        %490 = vmatmul.bf16.gmra.mxu0 %v442
        %v491 = vpop.f32.mrf.mxu0
        %v492 = vadd.f32 %v383, %v491
        %v493 = vpop.f32.mrf.mxu0
        %v494 = vadd.f32 %v388, %v493
        %495 = vmatmul.bf16.gmra.mxu0 %v445
        %v496 = vpop.f32.mrf.mxu0
        %v497 = vadd.f32 %v393, %v496
        %v498 = vpop.f32.mrf.mxu0
        %v499 = vadd.f32 %v398, %v498
        %500 = vmatmul.bf16.gmra.mxu0 %v448
        %v501 = vpop.f32.mrf.mxu0
        %v502 = vadd.f32 %v403, %v501
        %v503 = vpop.f32.mrf.mxu0
        %v504 = vadd.f32 %v408, %v503
        %505 = vmatmul.bf16.gmra.mxu0 %v451
        %v506 = vpop.f32.mrf.mxu0
        %v507 = vadd.f32 %v413, %v506
        %v508 = vpop.f32.mrf.mxu0
        %v509 = vadd.f32 %v418, %v508
        %510 = vdwg.mxu0
        %v511 = vmax.f32 %v463, 0.0
        %v512 = vmax.f32 %v492, 0.0
        %v513 = vmax.f32 %v465, 0.0
        %v514 = vmax.f32 %v494, 0.0
        %v515 = vmax.f32 %v468, 0.0
        %v516 = vmax.f32 %v497, 0.0
        %v517 = vmax.f32 %v470, 0.0
        %v518 = vmax.f32 %v499, 0.0
        %v519 = vmax.f32 %v473, 0.0
        %v520 = vmax.f32 %v502, 0.0
        %v521 = vmax.f32 %v475, 0.0
        %v522 = vmax.f32 %v504, 0.0
        %v523 = vmax.f32 %v478, 0.0
        %v524 = vmax.f32 %v507, 0.0
        %v525 = vmax.f32 %v480, 0.0
        %v526 = vmax.f32 %v509, 0.0
        %v527 = vld [vmem:[%s4] sm:$0xf]
        %v528 = vld [vmem:[%s4 + $0x4] sm:$0xf]
        %v529 = vld [vmem:[%s4 + $0x8] sm:$0xf]
        %v530 = vld [vmem:[%s4 + $0xc] sm:$0xf]
        %v531 = vld [vmem:[%s4 + $0x10] sm:$0xf]
        %v532 = vld [vmem:[%s4 + $0x14] sm:$0xf]
        %v533 = vld [vmem:[%s4 + $0x18] sm:$0xf]
        %v534 = vld [vmem:[%s4 + $0x1c] sm:$0xf]
        %v535 = vld [vmem:[%s4 + $0x20] sm:$0xf]
        %v536 = vld [vmem:[%s4 + $0x24] sm:$0xf]
        %v537 = vld [vmem:[%s4 + $0x28] sm:$0xf]
        %v538 = vld [vmem:[%s4 + $0x2c] sm:$0xf]
        %v539 = vld [vmem:[%s4 + $0x30] sm:$0xf]
        %v540 = vld [vmem:[%s4 + $0x34] sm:$0xf]
        %v541 = vld [vmem:[%s4 + $0x38] sm:$0xf]
        %v542 = vld [vmem:[%s4 + $0x3c] sm:$0xf]
        %v543 = vpack.c.bf16 %v513, %v511
        %v544 = vpack.c.bf16 %v514, %v512
        %v545 = vpack.c.bf16 %v517, %v515
        %v546 = vpack.c.bf16 %v518, %v516
        %v547 = vpack.c.bf16 %v521, %v519
        %v548 = vpack.c.bf16 %v522, %v520
        %v549 = vpack.c.bf16 %v525, %v523
        %v550 = vpack.c.bf16 %v526, %v524
        %v567 = vunpack.c.l.b16 %v527
        %v568 = vunpack.c.l.b16 %v528
        %v569 = vunpack.c.l.b16 %v529
        %v570 = vunpack.c.l.b16 %v530
        %v571 = vunpack.c.l.b16 %v531
        %v572 = vunpack.c.l.b16 %v532
        %v573 = vunpack.c.l.b16 %v533
        %v574 = vunpack.c.l.b16 %v534
        %v575 = vunpack.c.l.b16 %v535
        %v576 = vunpack.c.l.b16 %v536
        %v577 = vunpack.c.l.b16 %v537
        %v578 = vunpack.c.l.b16 %v538
        %v579 = vunpack.c.l.b16 %v539
        %v580 = vunpack.c.l.b16 %v540
        %v581 = vunpack.c.l.b16 %v541
        %v582 = vunpack.c.l.b16 %v542
        %v583 = vpack.c.b16 %v568, %v567
        %v584 = vpack.c.b16 %v570, %v569
        %v585 = vpack.c.b16 %v572, %v571
        %v586 = vpack.c.b16 %v574, %v573
        %v587 = vpack.c.b16 %v576, %v575
        %v588 = vpack.c.b16 %v578, %v577
        %v589 = vpack.c.b16 %v580, %v579
        %v590 = vpack.c.b16 %v582, %v581
        %vm591 = vcmask 523264
        %v593 = vsel %vm591, %v583, 0
        %v596 = vsel %vm591, %v584, 0
        %v599 = vsel %vm591, %v585, 0
        %v602 = vsel %vm591, %v586, 0
        %v605 = vsel %vm591, %v587, 0
        %v608 = vsel %vm591, %v588, 0
        %v611 = vsel %vm591, %v589, 0
        %v614 = vsel %vm591, %v590, 0
        %616 = vmatpush.bf16.msra.mxu0 0
        %617 = vmatpush.bf16.msra.mxu0 0
        %618 = vmatpush.bf16.msra.mxu0 0
        %619 = vmatpush.bf16.msra.mxu0 0
        %620 = vmatpush.bf16.msra.mxu0 %v549
        %621 = vmatpush.bf16.msra.mxu0 %v547
        %622 = vmatpush.bf16.msra.mxu0 %v545
        %623 = vmatpush.bf16.msra.mxu0 %v543
        %624 = vmatmul.bf16.gmra.mxu0 %v593
        %v625 = vpop.f32.mrf.mxu0
        %v626 = vadd.f32 0.0, %v625
        %v627 = vpop.f32.mrf.mxu0
        %v628 = vadd.f32 0.0, %v627
        %629 = vmatmul.bf16.gmra.mxu0 %v596
        %v630 = vpop.f32.mrf.mxu0
        %v631 = vadd.f32 0.0, %v630
        %v632 = vpop.f32.mrf.mxu0
        %v633 = vadd.f32 0.0, %v632
        %634 = vmatmul.bf16.gmra.mxu0 %v599
        %v635 = vpop.f32.mrf.mxu0
        %v636 = vadd.f32 0.0, %v635
        %v637 = vpop.f32.mrf.mxu0
        %v638 = vadd.f32 0.0, %v637
        %639 = vmatmul.bf16.gmra.mxu0 %v602
        %v640 = vpop.f32.mrf.mxu0
        %v641 = vadd.f32 0.0, %v640
        %v642 = vpop.f32.mrf.mxu0
        %v643 = vadd.f32 0.0, %v642
        %644 = vmatmul.bf16.gmra.mxu0 %v605
        %v645 = vpop.f32.mrf.mxu0
        %v646 = vadd.f32 0.0, %v645
        %v647 = vpop.f32.mrf.mxu0
        %v648 = vadd.f32 0.0, %v647
        %649 = vmatmul.bf16.gmra.mxu0 %v608
        %v650 = vpop.f32.mrf.mxu0
        %v651 = vadd.f32 0.0, %v650
        %v652 = vpop.f32.mrf.mxu0
        %v653 = vadd.f32 0.0, %v652
        %654 = vmatmul.bf16.gmra.mxu0 %v611
        %v655 = vpop.f32.mrf.mxu0
        %v656 = vadd.f32 0.0, %v655
        %v657 = vpop.f32.mrf.mxu0
        %v658 = vadd.f32 0.0, %v657
        %659 = vmatmul.bf16.gmra.mxu0 %v614
        %v660 = vpop.f32.mrf.mxu0
        %v661 = vadd.f32 0.0, %v660
        %v662 = vpop.f32.mrf.mxu0
        %v663 = vadd.f32 0.0, %v662
        %664 = vdwg.mxu0
        %665 = vmatpush.bf16.msra.mxu0 0
        %666 = vmatpush.bf16.msra.mxu0 0
        %667 = vmatpush.bf16.msra.mxu0 0
        %668 = vmatpush.bf16.msra.mxu0 0
        %669 = vmatpush.bf16.msra.mxu0 %v550
        %670 = vmatpush.bf16.msra.mxu0 %v548
        %671 = vmatpush.bf16.msra.mxu0 %v546
        %672 = vmatpush.bf16.msra.mxu0 %v544
        %673 = vmatmul.bf16.gmra.mxu0 %v593
        %v674 = vpop.f32.mrf.mxu0
        %v675 = vadd.f32 0.0, %v674
        %v676 = vpop.f32.mrf.mxu0
        %v677 = vadd.f32 0.0, %v676
        %678 = vmatmul.bf16.gmra.mxu0 %v596
        %v679 = vpop.f32.mrf.mxu0
        %v680 = vadd.f32 0.0, %v679
        %v681 = vpop.f32.mrf.mxu0
        %v682 = vadd.f32 0.0, %v681
        %683 = vmatmul.bf16.gmra.mxu0 %v599
        %v684 = vpop.f32.mrf.mxu0
        %v685 = vadd.f32 0.0, %v684
        %v686 = vpop.f32.mrf.mxu0
        %v687 = vadd.f32 0.0, %v686
        %688 = vmatmul.bf16.gmra.mxu0 %v602
        %v689 = vpop.f32.mrf.mxu0
        %v690 = vadd.f32 0.0, %v689
        %v691 = vpop.f32.mrf.mxu0
        %v692 = vadd.f32 0.0, %v691
        %693 = vmatmul.bf16.gmra.mxu0 %v605
        %v694 = vpop.f32.mrf.mxu0
        %v695 = vadd.f32 0.0, %v694
        %v696 = vpop.f32.mrf.mxu0
        %v697 = vadd.f32 0.0, %v696
        %698 = vmatmul.bf16.gmra.mxu0 %v608
        %v699 = vpop.f32.mrf.mxu0
        %v700 = vadd.f32 0.0, %v699
        %v701 = vpop.f32.mrf.mxu0
        %v702 = vadd.f32 0.0, %v701
        %703 = vmatmul.bf16.gmra.mxu0 %v611
        %v704 = vpop.f32.mrf.mxu0
        %v705 = vadd.f32 0.0, %v704
        %v706 = vpop.f32.mrf.mxu0
        %v707 = vadd.f32 0.0, %v706
        %708 = vmatmul.bf16.gmra.mxu0 %v614
        %v709 = vpop.f32.mrf.mxu0
        %v710 = vadd.f32 0.0, %v709
        %v711 = vpop.f32.mrf.mxu0
        %v712 = vadd.f32 0.0, %v711
        %713 = vdwg.mxu0
        %v714 = vsub.f32 0.0, %v626
        %v715 = vsub.f32 0.0, %v675
        %v716 = vsub.f32 0.0, %v628
        %v717 = vsub.f32 0.0, %v677
        %v718 = vsub.f32 0.0, %v631
        %v719 = vsub.f32 0.0, %v680
        %v720 = vsub.f32 0.0, %v633
        %v721 = vsub.f32 0.0, %v682
        %v722 = vsub.f32 0.0, %v636
        %v723 = vsub.f32 0.0, %v685
        %v724 = vsub.f32 0.0, %v638
        %v725 = vsub.f32 0.0, %v687
        %v726 = vsub.f32 0.0, %v641
        %v727 = vsub.f32 0.0, %v690
        %v728 = vsub.f32 0.0, %v643
        %v729 = vsub.f32 0.0, %v692
        %v730 = vsub.f32 0.0, %v646
        %v731 = vsub.f32 0.0, %v695
        %v732 = vsub.f32 0.0, %v648
        %v733 = vsub.f32 0.0, %v697
        %v734 = vsub.f32 0.0, %v651
        %v735 = vsub.f32 0.0, %v700
        %v736 = vsub.f32 0.0, %v653
        %v737 = vsub.f32 0.0, %v702
        %v738 = vsub.f32 0.0, %v656
        %v739 = vsub.f32 0.0, %v705
        %v740 = vsub.f32 0.0, %v658
        %v741 = vsub.f32 0.0, %v707
        %v742 = vsub.f32 0.0, %v661
        %v743 = vsub.f32 0.0, %v710
        %v744 = vsub.f32 0.0, %v663
        %v745 = vsub.f32 0.0, %v712
        %v746 = vmul.f32 %v714, 1.442695
        %v747 = vpow.pop %v746
        %v748 = vmul.f32 %v715, 1.442695
        %v749 = vpow.pop %v748
        %v750 = vmul.f32 %v716, 1.442695
        %v751 = vpow.pop %v750
        %v752 = vmul.f32 %v717, 1.442695
        %v753 = vpow.pop %v752
        %v754 = vmul.f32 %v718, 1.442695
        %v755 = vpow.pop %v754
        %v756 = vmul.f32 %v719, 1.442695
        %v757 = vpow.pop %v756
        %v758 = vmul.f32 %v720, 1.442695
        %v759 = vpow.pop %v758
        %v760 = vmul.f32 %v721, 1.442695
        %v761 = vpow.pop %v760
        %v762 = vmul.f32 %v722, 1.442695
        %v763 = vpow.pop %v762
        %v764 = vmul.f32 %v723, 1.442695
        %v765 = vpow.pop %v764
        %v766 = vmul.f32 %v724, 1.442695
        %v767 = vpow.pop %v766
        %v768 = vmul.f32 %v725, 1.442695
        %v769 = vpow.pop %v768
        %v770 = vmul.f32 %v726, 1.442695
        %v771 = vpow.pop %v770
        %v772 = vmul.f32 %v727, 1.442695
        %v773 = vpow.pop %v772
        %v774 = vmul.f32 %v728, 1.442695
        %v775 = vpow.pop %v774
        %v776 = vmul.f32 %v729, 1.442695
        %v777 = vpow.pop %v776
        %v778 = vmul.f32 %v730, 1.442695
        %v779 = vpow.pop %v778
        %v780 = vmul.f32 %v731, 1.442695
        %v781 = vpow.pop %v780
        %v782 = vmul.f32 %v732, 1.442695
        %v783 = vpow.pop %v782
        %v784 = vmul.f32 %v733, 1.442695
        %v785 = vpow.pop %v784
        %v786 = vmul.f32 %v734, 1.442695
        %v787 = vpow.pop %v786
        %v788 = vmul.f32 %v735, 1.442695
        %v789 = vpow.pop %v788
        %v790 = vmul.f32 %v736, 1.442695
        %v791 = vpow.pop %v790
        %v792 = vmul.f32 %v737, 1.442695
        %v793 = vpow.pop %v792
        %v794 = vmul.f32 %v738, 1.442695
        %v795 = vpow.pop %v794
        %v796 = vmul.f32 %v739, 1.442695
        %v797 = vpow.pop %v796
        %v798 = vmul.f32 %v740, 1.442695
        %v799 = vpow.pop %v798
        %v800 = vmul.f32 %v741, 1.442695
        %v801 = vpow.pop %v800
        %v802 = vmul.f32 %v742, 1.442695
        %v803 = vpow.pop %v802
        %v804 = vmul.f32 %v743, 1.442695
        %v805 = vpow.pop %v804
        %v806 = vmul.f32 %v744, 1.442695
        %v807 = vpow.pop %v806
        %v808 = vmul.f32 %v745, 1.442695
        %v809 = vpow.pop %v808
        %v810 = vadd.f32 %v747, 1.0
        %v811 = vadd.f32 %v749, 1.0
        %v812 = vadd.f32 %v751, 1.0
        %v813 = vadd.f32 %v753, 1.0
        %v814 = vadd.f32 %v755, 1.0
        %v815 = vadd.f32 %v757, 1.0
        %v816 = vadd.f32 %v759, 1.0
        %v817 = vadd.f32 %v761, 1.0
        %v818 = vadd.f32 %v763, 1.0
        %v819 = vadd.f32 %v765, 1.0
        %v820 = vadd.f32 %v767, 1.0
        %v821 = vadd.f32 %v769, 1.0
        %v822 = vadd.f32 %v771, 1.0
        %v823 = vadd.f32 %v773, 1.0
        %v824 = vadd.f32 %v775, 1.0
        %v825 = vadd.f32 %v777, 1.0
        %v826 = vadd.f32 %v779, 1.0
        %v827 = vadd.f32 %v781, 1.0
        %v828 = vadd.f32 %v783, 1.0
        %v829 = vadd.f32 %v785, 1.0
        %v830 = vadd.f32 %v787, 1.0
        %v831 = vadd.f32 %v789, 1.0
        %v832 = vadd.f32 %v791, 1.0
        %v833 = vadd.f32 %v793, 1.0
        %v834 = vadd.f32 %v795, 1.0
        %v835 = vadd.f32 %v797, 1.0
        %v836 = vadd.f32 %v799, 1.0
        %v837 = vadd.f32 %v801, 1.0
        %v838 = vadd.f32 %v803, 1.0
        %v839 = vadd.f32 %v805, 1.0
        %v840 = vadd.f32 %v807, 1.0
        %v841 = vadd.f32 %v809, 1.0
        %v842 = vrcp.pop %v810
        %v843 = vrcp.pop %v811
        %v844 = vrcp.pop %v812
        %v845 = vrcp.pop %v813
        %v846 = vrcp.pop %v814
        %v847 = vrcp.pop %v815
        %v848 = vrcp.pop %v816
        %v849 = vrcp.pop %v817
        %v850 = vrcp.pop %v818
        %v851 = vrcp.pop %v819
        %v852 = vrcp.pop %v820
        %v853 = vrcp.pop %v821
        %v854 = vrcp.pop %v822
        %v855 = vrcp.pop %v823
        %v856 = vrcp.pop %v824
        %v857 = vrcp.pop %v825
        %v858 = vrcp.pop %v826
        %v859 = vrcp.pop %v827
        %v860 = vrcp.pop %v828
        %v861 = vrcp.pop %v829
        %v862 = vrcp.pop %v830
        %v863 = vrcp.pop %v831
        %v864 = vrcp.pop %v832
        %v865 = vrcp.pop %v833
        %v866 = vrcp.pop %v834
        %v867 = vrcp.pop %v835
        %v868 = vrcp.pop %v836
        %v869 = vrcp.pop %v837
        %v870 = vrcp.pop %v838
        %v871 = vrcp.pop %v839
        %v872 = vrcp.pop %v840
        %v873 = vrcp.pop %v841
        %v874 = vpack.c.bf16 %v843, %v842
        %v875 = vpack.c.bf16 %v845, %v844
        %v876 = vpack.c.bf16 %v847, %v846
        %v877 = vpack.c.bf16 %v849, %v848
        %v878 = vpack.c.bf16 %v851, %v850
        %v879 = vpack.c.bf16 %v853, %v852
        %v880 = vpack.c.bf16 %v855, %v854
        %v881 = vpack.c.bf16 %v857, %v856
        %v882 = vpack.c.bf16 %v859, %v858
        %v883 = vpack.c.bf16 %v861, %v860
        %v884 = vpack.c.bf16 %v863, %v862
        %v885 = vpack.c.bf16 %v865, %v864
        %v886 = vpack.c.bf16 %v867, %v866
        %v887 = vpack.c.bf16 %v869, %v868
        %v888 = vpack.c.bf16 %v871, %v870
        %v889 = vpack.c.bf16 %v873, %v872
        %890 = vst [vmem:[%s242] sm:$0xff] %v874
        %891 = vst [vmem:[%s242 + $0x8] sm:$0xff] %v875
        %892 = vst [vmem:[%s242 + $0x10] sm:$0xff] %v876
        %893 = vst [vmem:[%s242 + $0x18] sm:$0xff] %v877
        %894 = vst [vmem:[%s242 + $0x20] sm:$0xff] %v878
        %895 = vst [vmem:[%s242 + $0x28] sm:$0xff] %v879
        %896 = vst [vmem:[%s242 + $0x30] sm:$0xff] %v880
        %897 = vst [vmem:[%s242 + $0x38] sm:$0xff] %v881
        %898 = vst [vmem:[%s242 + $0x40] sm:$0xff] %v882
        %899 = vst [vmem:[%s242 + $0x48] sm:$0xff] %v883
        %900 = vst [vmem:[%s242 + $0x50] sm:$0xff] %v884
        %901 = vst [vmem:[%s242 + $0x58] sm:$0xff] %v885
        %902 = vst [vmem:[%s242 + $0x60] sm:$0xff] %v886
        %903 = vst [vmem:[%s242 + $0x68] sm:$0xff] %v887
        %904 = vst [vmem:[%s242 + $0x70] sm:$0xff] %v888
        %905 = vst [vmem:[%s242 + $0x78] sm:$0xff] %v889
        %s906 = sand.u32 %s153, 1
        %s907 = scalar_lea.sflag [#allocation3], %s906
        %s908 = sand.u32 %s153, 1
        %s909 = smul.addr %s908, 128
        %s910 = scalar_lea.vmem [#allocation2], %s909
        // Predicated region
        $region41: #{tpu_custom_call.1} parent=39 // pred_check
          %p911 = pneg %p163
        $region42: #{tpu_custom_call.1} parent=39 // pred_check_branch
          %913 = sbr.rel (%p911) target = $region44
        $region43: #{tpu_custom_call.1} parent=39 // pred_region
          %s914 = smul.u32 2, %s24
          %916 = vsyncadd %s907, 0
          %s917 = smul.addr %s23, 32
          %s918 = sadd.s32 %s914, %s917
          %s919 = smul.addr %s918, 4
          %s920 = scalar_lea.hbm %s5, %s919
          %s921 = sshll.u32 %s910, 4
          %s922 = int_to_ptr.vmem [resolvable:$true] %s921
          %s923 = sshll.u32 %s920, 4
          %s924 = int_to_ptr.hbm [resolvable:$true] %s923
          %929 = dma.vmem_to_hbm [thread:$0]  %s922, 2048, %s924, %s907, 128, 128, 8
        $region44: #{tpu_custom_call.1} parent=39 // pred_fallthru
          _
      $region40: #{tpu_custom_call.1} parent=5 // pred_fallthru
        _
      %p930 = scmp.le.s32.totalorder 2, %s14
      // Predicated region
      $region45: #{tpu_custom_call.1} parent=5 // pred_check
        %p931 = pneg %p930
      $region46: #{tpu_custom_call.1} parent=5 // pred_check_branch
        %933 = sbr.rel (%p931) target = $region48
      $region47: #{tpu_custom_call.1} parent=5 // pred_region
        %s934 = ssub.s32 %s14, 2
        // Predicated region
        $region49: #{tpu_custom_call.1} parent=47 // pred_check
          %p935 = pneg %p169
        $region50: #{tpu_custom_call.1} parent=47 // pred_check_branch
          %937 = sbr.rel (%p935) target = $region52
        $region51: #{tpu_custom_call.1} parent=47 // pred_region
          %s938 = sand.u32 %s154, 1
          %s939 = scalar_lea.sflag [#allocation3], %s938
          %s940 = sand.u32 %s154, 1
          %s941 = smul.addr %s940, 128
          %s942 = scalar_lea.vmem [#allocation2], %s941
          %944 = dma.done %s939, 2048
        $region52: #{tpu_custom_call.1} parent=47 // pred_fallthru
          _
      $region48: #{tpu_custom_call.1} parent=5 // pred_fallthru
        _
    $region6: #{tpu_custom_call.1} parent=1 // loop_footer
      %s18 = sadd.s32 1, %s14
    $region7: #{tpu_custom_call.1} parent=1 // loop_footer_branch
      %13 = sbr.rel target = $region3
    $region8: #{tpu_custom_call.1} parent=1 // loop_exit
      _
    %945 = vsyncpa [#allocation3], 1
    %s946 = scalar_lea.sflag [#allocation3], 1
    %947 = vsyncpa %s946, 1

</llo_original>
